<compile_context>
chip_gen: v7x
topology: tpu7x:2x2x1
jax: 0.10.0
libtpu: 0.0.40
codegen_flags: <defaults>
</compile_context>

<pallas_src>
import math

import jax
import jax.numpy as jnp
from jax import lax
from jax.experimental import pallas as pl
from jax.experimental.pallas import tpu as pltpu


# ----------------------------- packed-weight layouts -----------------------------

def _ceil8(x):
    return (x + 7) // 8 * 8


# patient pack: the embed_layer rows sit at fixed, feature-size-independent
# offsets so project_kernel needs no knowledge of feature_size.
PAT_EMB_W = 0
PAT_EMB_B = 8


def code_pack_layout(D, F):
    """Row offsets inside the packed code-branch weight buffer (rows, D)."""
    b = _ceil8(4 * D + F + 1)
    return dict(
        gc1=0,                 # D rows
        gc2=D,                 # D rows
        wih_p=2 * D,           # D rows   (patient-row part of W_ih)
        whh=3 * D,             # D rows
        wih_f=4 * D,           # F rows   (feature part of W_ih)
        wih_t=4 * D + F,       # 1 row    (timediff part; adjacent to wih_f so the
                               #           batched kernel can use one [feat|td] slice)
        b=b,                   # 1 row    (b_ih + b_hh)
        rows=_ceil8(b + 1),
    )


def pat_pack_layout(D, F):
    """Row offsets inside the packed patient-branch weight buffer (rows, D)."""
    b = _ceil8(16 + 2 * D + F + 1)
    return dict(
        emb_w=PAT_EMB_W,       # 1 row  NormalLinear(1, D) weight
        emb_b=PAT_EMB_B,       # 1 row  NormalLinear(1, D) bias
        wih_c=16,              # D rows (code-mean part of W_ih)
        whh=16 + D,            # D rows
        wih_f=16 + 2 * D,      # F rows
        wih_t=16 + 2 * D + F,  # 1 row
        b=b,                   # 1 row
        rows=_ceil8(b + 1),
    )


# ----------------------------- in-kernel helpers -----------------------------

def _w(ref, off, n):
    """Static row-slice view of the packed weight ref."""
    return ref[pl.ds(off, n), :]


def _gcn2(x, adj, w1, w2):
    """relu(adj @ (relu(adj @ (x @ W1)) @ W2)) — both GCN layers use ReLU.
    dropout between gc1 and gc2 is identity in eval mode."""
    s1 = jnp.dot(x, w1, preferred_element_type=jnp.float32)
    h1 = jnp.maximum(jnp.dot(adj, s1, preferred_element_type=jnp.float32), 0.0)
    s2 = jnp.dot(h1, w2, preferred_element_type=jnp.float32)
    return jnp.maximum(jnp.dot(adj, s2, preferred_element_type=jnp.float32), 0.0)


def _select_rows(idx, n_rows):
    """(k,1) int32 indices -> (k, n_rows) one-hot f32 selection matrix.
    NOTE: out-of-range indices silently select nothing (zero row)."""
    k = idx.shape[0]
    lane = lax.broadcasted_iota(jnp.int32, (k, n_rows), 1)
    return (lane == idx).astype(jnp.float32)


def _l2norm_rows(v):
    """F.normalize(v, dim=1) using a single EUP rsqrt."""
    ssq = jnp.sum(v * v, axis=1, keepdims=True)
    return v * lax.rsqrt(jnp.maximum(ssq, 1e-24))


# ------------------------------ single-event kernels ------------------------------
# ids buffer layout (int32, shape (R, 1), VMEM):
#   row 0            : patientid            (rows 1..7 are padding)
#   rows 8 .. 8+K    : codeid
#   rows 8+K .. +A   : ancestorid           (only in the fused code+anc kernel)

def code_update_kernel(ids_ref, cd_ref, adj_ref, pd_ref, td_ref, feat_ref,
                       wp_ref, out_ref):
    """GCN x2 -> gather(codeid) -> RNNCell(tanh, split input matmul) -> normalize."""
    N, D = cd_ref.shape
    K = td_ref.shape[0]
    F = feat_ref.shape[1]
    L = code_pack_layout(D, F)
    x2 = _gcn2(cd_ref[...], adj_ref[...], _w(wp_ref, L['gc1'], D), _w(wp_ref, L['gc2'], D))
    ids = ids_ref[...]
    prow = jnp.dot(_select_rows(ids[0:1], pd_ref.shape[0]), pd_ref[...],
                   preferred_element_type=jnp.float32)                     # (1, D)
    code_embed = jnp.dot(_select_rows(ids[8:8 + K], N), x2,
                         preferred_element_type=jnp.float32)               # x2[codeid]
    z = (jnp.dot(prow, _w(wp_ref, L['wih_p'], D), preferred_element_type=jnp.float32)
         + td_ref[...] * _w(wp_ref, L['wih_t'], 1)
         + jnp.dot(feat_ref[...], _w(wp_ref, L['wih_f'], F), preferred_element_type=jnp.float32)
         + jnp.dot(code_embed, _w(wp_ref, L['whh'], D), preferred_element_type=jnp.float32)
         + _w(wp_ref, L['b'], 1))
    out_ref[...] = _l2norm_rows(jnp.tanh(z))


def ancestor_update_kernel(ids_ref, cd_ref, adj_ref, wp_ref, out_ref):
    """GCN x2 -> gather(ancestorid) -> normalize. ids = ancestorid only."""
    N, D = cd_ref.shape
    x2 = _gcn2(cd_ref[...], adj_ref[...], _w(wp_ref, 0, D), _w(wp_ref, D, D))
    sel = _select_rows(ids_ref[...], N)
    out_ref[...] = _l2norm_rows(jnp.dot(sel, x2, preferred_element_type=jnp.float32))


def code_anc_update_kernel(ids_ref, cd_ref, adj_ref, pd_ref, td_ref, feat_ref,
                           wp_ref, code_out_ref, anc_out_ref):
    """One GCN evaluation, both code_update and ancestor_update outputs."""
    N, D = cd_ref.shape
    K = td_ref.shape[0]
    F = feat_ref.shape[1]
    A = ids_ref.shape[0] - 8 - K
    L = code_pack_layout(D, F)
    x2 = _gcn2(cd_ref[...], adj_ref[...], _w(wp_ref, L['gc1'], D), _w(wp_ref, L['gc2'], D))
    ids = ids_ref[...]
    prow = jnp.dot(_select_rows(ids[0:1], pd_ref.shape[0]), pd_ref[...],
                   preferred_element_type=jnp.float32)
    code_embed = jnp.dot(_select_rows(ids[8:8 + K], N), x2,
                         preferred_element_type=jnp.float32)
    z = (jnp.dot(prow, _w(wp_ref, L['wih_p'], D), preferred_element_type=jnp.float32)
         + td_ref[...] * _w(wp_ref, L['wih_t'], 1)
         + jnp.dot(feat_ref[...], _w(wp_ref, L['wih_f'], F), preferred_element_type=jnp.float32)
         + jnp.dot(code_embed, _w(wp_ref, L['whh'], D), preferred_element_type=jnp.float32)
         + _w(wp_ref, L['b'], 1))
    code_out_ref[...] = _l2norm_rows(jnp.tanh(z))
    anc_out_ref[...] = _l2norm_rows(
        jnp.dot(_select_rows(ids[8 + K:8 + K + A], N), x2,
                preferred_element_type=jnp.float32))


def patient_update_kernel(ids_ref, cd_ref, pd_ref, td_ref, feat_ref, wp_ref, out_ref):
    """mean(code_dynamic[codeid]) -> RNNCell(tanh) -> normalize."""
    N, D = cd_ref.shape
    F = feat_ref.shape[1]
    K = ids_ref.shape[0] - 8
    L = pat_pack_layout(D, F)
    ids = ids_ref[...]
    prow = jnp.dot(_select_rows(ids[0:1], pd_ref.shape[0]), pd_ref[...],
                   preferred_element_type=jnp.float32)
    sel_c = _select_rows(ids[8:8 + K], N)
    w_mean = jnp.sum(sel_c, axis=0, keepdims=True) * (1.0 / K)
    code_embed = jnp.dot(w_mean, cd_ref[...], preferred_element_type=jnp.float32)
    z = (jnp.dot(code_embed, _w(wp_ref, L['wih_c'], D), preferred_element_type=jnp.float32)
         + td_ref[...] * _w(wp_ref, L['wih_t'], 1)
         + jnp.dot(feat_ref[...], _w(wp_ref, L['wih_f'], F), preferred_element_type=jnp.float32)
         + jnp.dot(prow, _w(wp_ref, L['whh'], D), preferred_element_type=jnp.float32)
         + _w(wp_ref, L['b'], 1))
    out_ref[...] = _l2norm_rows(jnp.tanh(z))


def project_kernel(ids_ref, pd_ref, td_ref, wp_ref, out_ref):
    """patient_row * (1 + Linear(1, D)(timediff)); rank-1 linear as VPU broadcast."""
    prow = jnp.dot(_select_rows(ids_ref[...], pd_ref.shape[0]), pd_ref[...],
                   preferred_element_type=jnp.float32)
    emb = td_ref[...] * _w(wp_ref, PAT_EMB_W, 1) + _w(wp_ref, PAT_EMB_B, 1)
    out_ref[...] = prow * (1.0 + emb)


def patient_update_project_kernel(ids_ref, cd_ref, pd_ref, td_ref, feat_ref,
                                  wp_ref, pat_out_ref, proj_out_ref):
    """Fused patient_update + project (shared patient row & timediff, one launch)."""
    N, D = cd_ref.shape
    F = feat_ref.shape[1]
    K = ids_ref.shape[0] - 8
    L = pat_pack_layout(D, F)
    ids = ids_ref[...]
    prow = jnp.dot(_select_rows(ids[0:1], pd_ref.shape[0]), pd_ref[...],
                   preferred_element_type=jnp.float32)
    sel_c = _select_rows(ids[8:8 + K], N)
    w_mean = jnp.sum(sel_c, axis=0, keepdims=True) * (1.0 / K)
    code_embed = jnp.dot(w_mean, cd_ref[...], preferred_element_type=jnp.float32)
    z = (jnp.dot(code_embed, _w(wp_ref, L['wih_c'], D), preferred_element_type=jnp.float32)
         + td_ref[...] * _w(wp_ref, L['wih_t'], 1)
         + jnp.dot(feat_ref[...], _w(wp_ref, L['wih_f'], F), preferred_element_type=jnp.float32)
         + jnp.dot(prow, _w(wp_ref, L['whh'], D), preferred_element_type=jnp.float32)
         + _w(wp_ref, L['b'], 1))
    pat_out_ref[...] = _l2norm_rows(jnp.tanh(z))
    emb = td_ref[...] * _w(wp_ref, L['emb_w'], 1) + _w(wp_ref, L['emb_b'], 1)
    proj_out_ref[...] = prow * (1.0 + emb)


# ------------------------------ batched event kernel ------------------------------

def code_update_events_kernel(idx_ref, cd_ref, adj_ref, wp_ref, pd_ref, tf_ref, out_ref):
    """One grid step = one event.
    idx_ref: SMEM prefetch table (E, 1+K) int32 — col 0 patientid, cols 1..K codeid.
    cd/adj/wp/pd: resident VMEM blocks (index (0,0) every step).
    tf_ref: per-event (K, F+1) block  = [features | timediff].
    GCN is recomputed per event (a few tiny matmuls, MXU has slack) so the
    event axis stays fully independent -> safe to mark "parallel" (2 TCs on v7x).
    """
    e = pl.program_id(0)
    N, D = cd_ref.shape
    P = pd_ref.shape[0]
    K, Ft = tf_ref.shape
    F = Ft - 1
    L = code_pack_layout(D, F)

    x2 = _gcn2(cd_ref[...], adj_ref[...], _w(wp_ref, L['gc1'], D), _w(wp_ref, L['gc2'], D))

    # patient row gather from the SMEM-prefetched id (one-hot over P rows)
    pid = idx_ref[e, 0]
    sel_p = (lax.broadcasted_iota(jnp.int32, (1, P), 1) == pid).astype(jnp.float32)
    prow = jnp.dot(sel_p, pd_ref[...], preferred_element_type=jnp.float32)

    # code one-hot built from SMEM scalars; iotas hoisted out of the j loop
    row_i = lax.broadcasted_iota(jnp.int32, (K, N), 0)
    lane_i = lax.broadcasted_iota(jnp.int32, (K, N), 1)
    sel_c = jnp.zeros((K, N), jnp.float32)
    for j in range(K):
        cid = idx_ref[e, 1 + j]
        sel_c = jnp.where((row_i == j) & (lane_i == cid), 1.0, sel_c)
    code_embed = jnp.dot(sel_c, x2, preferred_element_type=jnp.float32)

    # [feat | td] @ [wih_f ; wih_t] uses one contiguous slice of the pack
    z = (jnp.dot(prow, _w(wp_ref, L['wih_p'], D), preferred_element_type=jnp.float32)
         + jnp.dot(tf_ref[...], _w(wp_ref, L['wih_f'], F + 1), preferred_element_type=jnp.float32)
         + jnp.dot(code_embed, _w(wp_ref, L['whh'], D), preferred_element_type=jnp.float32)
         + _w(wp_ref, L['b'], 1))
    out_ref[...] = _l2norm_rows(jnp.tanh(z))


# ----------------------------- pallas_call wrappers -----------------------------

def _vmem_call(kernel, out_shape, *args):
    """Grid-less pallas_call with everything resident in VMEM."""
    multi = isinstance(out_shape, (tuple, list))
    vmem = pl.BlockSpec(memory_space=pltpu.MemorySpace.VMEM)
    out_specs = tuple(
        pl.BlockSpec(memory_space=pltpu.MemorySpace.VMEM) for _ in out_shape
    ) if multi else vmem
    return pl.pallas_call(
        kernel,
        out_shape=tuple(out_shape) if multi else out_shape,
        in_specs=[pl.BlockSpec(memory_space=pltpu.MemorySpace.VMEM)] * len(args),
        out_specs=out_specs,
    )(*args)


def _pack_ids(patientid=None, codeid=None, ancestorid=None):
    """Pack ids into one small int32 (R,1) buffer: [pid (padded to 8) | codes | ancs]."""
    parts = []
    if patientid is not None:
        p = jnp.asarray(patientid, jnp.int32).reshape(-1)     # assumes a single patient id
        parts.append(jnp.pad(p, (0, 8 - p.shape[0])))
    if codeid is not None:
        parts.append(jnp.asarray(codeid, jnp.int32).reshape(-1))
    if ancestorid is not None:
        parts.append(jnp.asarray(ancestorid, jnp.int32).reshape(-1))
    return jnp.concatenate(parts).reshape(-1, 1)


# --------------------------------- parameters ---------------------------------

def pack_params(raw, D, F):
    """Pack per-branch weights into single contiguous (rows, D) buffers (done once)."""
    Lc = code_pack_layout(D, F)
    cp = jnp.zeros((Lc['rows'], D), jnp.float32)
    cp = cp.at[Lc['gc1']:Lc['gc1'] + D].set(raw['gc1_w'])
    cp = cp.at[Lc['gc2']:Lc['gc2'] + D].set(raw['gc2_w'])
    cp = cp.at[Lc['wih_p']:Lc['wih_p'] + D].set(raw['code_wih_p'])
    cp = cp.at[Lc['whh']:Lc['whh'] + D].set(raw['code_whh'])
    cp = cp.at[Lc['wih_f']:Lc['wih_f'] + F].set(raw['code_wih_f'])
    cp = cp.at[Lc['wih_t']].set(raw['code_wih_t'][0])
    cp = cp.at[Lc['b']].set(raw['code_b'][0])

    Lp = pat_pack_layout(D, F)
    pp = jnp.zeros((Lp['rows'], D), jnp.float32)
    pp = pp.at[Lp['emb_w']].set(raw['embed_w'][0])
    pp = pp.at[Lp['emb_b']].set(raw['embed_b'][0])
    pp = pp.at[Lp['wih_c']:Lp['wih_c'] + D].set(raw['pat_wih_c'])
    pp = pp.at[Lp['whh']:Lp['whh'] + D].set(raw['pat_whh'])
    pp = pp.at[Lp['wih_f']:Lp['wih_f'] + F].set(raw['pat_wih_f'])
    pp = pp.at[Lp['wih_t']].set(raw['pat_wih_t'][0])
    pp = pp.at[Lp['b']].set(raw['pat_b'][0])
    return dict(code_pack=cp, pat_pack=pp)


def init_params(key, dynamic_size, feature_size):
    D, F = dynamic_size, feature_size
    ks = jax.random.split(key, 14)
    u = lambda k, shape, s: jax.random.uniform(k, shape, jnp.float32, -s, s)
    s_gcn = 1.0 / math.sqrt(D)
    s_rnn = 1.0 / math.sqrt(D)
    s_emb = 1.0 / math.sqrt(1.0)          # NormalLinear(1, D): normal(0, 1/sqrt(in))
    p = dict(
        gc1_w=u(ks[0], (D, D), s_gcn),
        gc2_w=u(ks[1], (D, D), s_gcn),
        # nn.RNNCell(code_update): W_ih stored transposed & pre-split along the
        # input [patient_row (D) | timediff (1) | features (F)]; bias = b_ih + b_hh.
        code_wih_p=u(ks[2], (D, D), s_rnn),
        code_wih_t=u(ks[3], (1, D), s_rnn),
        code_wih_f=u(ks[4], (F, D), s_rnn),
        code_whh=u(ks[5], (D, D), s_rnn),
        code_b=u(ks[6], (1, D), s_rnn),
        # nn.RNNCell(patient_update): input = [code_mean (D) | timediff (1) | feat (F)]
        pat_wih_c=u(ks[7], (D, D), s_rnn),
        pat_wih_t=u(ks[8], (1, D), s_rnn),
        pat_wih_f=u(ks[9], (F, D), s_rnn),
        pat_whh=u(ks[10], (D, D), s_rnn),
        pat_b=u(ks[11], (1, D), s_rnn),
        embed_w=s_emb * jax.random.normal(ks[12], (1, D), jnp.float32),
        embed_b=s_emb * jax.random.normal(ks[13], (1, D), jnp.float32),
    )
    p.update(pack_params(p, D, F))
    return p


# ----------------------------------- forward -----------------------------------

def forward(params, patient_dynamic, code_dynamic, init_code_dynamic, adj,
            patientid, codeid, ancestorid, features=None, timediffs=None,
            select=None):
    """Matches ModelTree2.forward (init_code_dynamic is unused, as in the module)."""
    D = params['gc1_w'].shape[0]

    if select == 'code_update':
        ids = _pack_ids(patientid=patientid, codeid=codeid)
        return _vmem_call(
            code_update_kernel,
            jax.ShapeDtypeStruct((codeid.shape[0], D), jnp.float32),
            ids, code_dynamic, adj, patient_dynamic, timediffs, features,
            params['code_pack'])

    elif select == 'ancestor_update':
        ids = _pack_ids(ancestorid=ancestorid)
        return _vmem_call(
            ancestor_update_kernel,
            jax.ShapeDtypeStruct((ancestorid.shape[0], D), jnp.float32),
            ids, code_dynamic, adj, params['code_pack'])

    elif select == 'patient_update':
        ids = _pack_ids(patientid=patientid, codeid=codeid)
        return _vmem_call(
            patient_update_kernel,
            jax.ShapeDtypeStruct((1, D), jnp.float32),
            ids, code_dynamic, patient_dynamic, timediffs, features,
            params['pat_pack'])

    elif select == 'project':
        ids = jnp.asarray(patientid, jnp.int32).reshape(-1, 1)
        return _vmem_call(
            project_kernel,
            jax.ShapeDtypeStruct((1, D), jnp.float32),
            ids, patient_dynamic, timediffs, params['pat_pack'])


def forward_code_and_ancestor_update(params, patient_dynamic, code_dynamic, adj,
                                     patientid, codeid, ancestorid,
                                     features, timediffs):
    """Fused: one pallas_call, one GCN evaluation, both outputs."""
    D = params['gc1_w'].shape[0]
    ids = _pack_ids(patientid=patientid, codeid=codeid, ancestorid=ancestorid)
    return _vmem_call(
        code_anc_update_kernel,
        (jax.ShapeDtypeStruct((codeid.shape[0], D), jnp.float32),
         jax.ShapeDtypeStruct((ancestorid.shape[0], D), jnp.float32)),
        ids, code_dynamic, adj, patient_dynamic, timediffs, features,
        params['code_pack'])


def forward_patient_update_and_project(params, patient_dynamic, code_dynamic,
                                       patientid, codeid, features, timediffs):
    """Fused: patient_update and project in one launch (shared patient row / td)."""
    D = params['gc1_w'].shape[0]
    ids = _pack_ids(patientid=patientid, codeid=codeid)
    return _vmem_call(
        patient_update_project_kernel,
        (jax.ShapeDtypeStruct((1, D), jnp.float32),
         jax.ShapeDtypeStruct((1, D), jnp.float32)),
        ids, code_dynamic, patient_dynamic, timediffs, features,
        params['pat_pack'])


def forward_code_update_events(params, patient_dynamic, code_dynamic, adj,
                               patientid_tbl, codeid_tbl, features_tbl,
                               timediffs_tbl):
    """Batched code_update over E events in ONE gridded pallas_call.

    patientid_tbl: (E,) int32; codeid_tbl: (E, K) int32;
    features_tbl: (E, K, F) f32; timediffs_tbl: (E, K, 1) f32.  Returns (E, K, D).
    """
    E, K = codeid_tbl.shape
    N, D = code_dynamic.shape
    P = patient_dynamic.shape[0]
    F = features_tbl.shape[-1]
    R = params['code_pack'].shape[0]

    # id tables -> one SMEM prefetch buffer; timediff folded into features once
    idx_tbl = jnp.concatenate(
        [jnp.asarray(patientid_tbl, jnp.int32).reshape(E, 1),
         jnp.asarray(codeid_tbl, jnp.int32)], axis=1)                       # (E, 1+K)
    tf = jnp.concatenate([features_tbl, timediffs_tbl], axis=-1)            # (E, K, F+1)

    grid_spec = pltpu.PrefetchScalarGridSpec(
        num_scalar_prefetch=1,
        grid=(E,),
        in_specs=[
            pl.BlockSpec((N, D), lambda e, tbl: (0, 0)),          # code_dynamic (resident)
            pl.BlockSpec((N, N), lambda e, tbl: (0, 0)),          # adj (resident)
            pl.BlockSpec((R, D), lambda e, tbl: (0, 0)),          # packed weights (resident)
            pl.BlockSpec((P, D), lambda e, tbl: (0, 0)),          # patient_dynamic (resident)
            pl.BlockSpec((None, K, F + 1), lambda e, tbl: (e, 0, 0)),  # per-event [feat|td]
        ],
        out_specs=pl.BlockSpec((None, K, D), lambda e, tbl: (e, 0, 0)),
    )
    return pl.pallas_call(
        code_update_events_kernel,
        out_shape=jax.ShapeDtypeStruct((E, K, D), jnp.float32),
        grid_spec=grid_spec,
        compiler_params=pltpu.CompilerParams(dimension_semantics=("parallel",)),
    )(idx_tbl, code_dynamic, adj, params['code_pack'], patient_dynamic, tf)


# ---------------------------- pure-JAX references ----------------------------

def _ref_gcn2(x, adj, w1, w2):
    h1 = jnp.maximum(adj @ (x @ w1), 0.0)
    return jnp.maximum(adj @ (h1 @ w2), 0.0)


def _ref_normalize(v):
    n = jnp.sqrt(jnp.sum(v * v, axis=1, keepdims=True))
    return v / jnp.maximum(n, 1e-12)


def _ref_code_update(params, pd, cd, adj, pid, cid, td, feat):
    x2 = _ref_gcn2(cd, adj, params['gc1_w'], params['gc2_w'])
    code_embed = x2[cid]
    pe = jnp.tile(pd[pid], (cid.shape[0], 1))
    wih = jnp.concatenate([params['code_wih_p'], params['code_wih_t'],
                           params['code_wih_f']], axis=0)
    inp = jnp.concatenate([pe, td, feat], axis=1)
    h = jnp.tanh(inp @ wih + code_embed @ params['code_whh'] + params['code_b'])
    return _ref_normalize(h)


def _ref_ancestor_update(params, cd, adj, aid):
    x2 = _ref_gcn2(cd, adj, params['gc1_w'], params['gc2_w'])
    return _ref_normalize(x2[aid])


def _ref_patient_update(params, pd, cd, pid, cid, td, feat):
    pe = pd[pid]
    ce = jnp.mean(cd[cid], axis=0, keepdims=True)
    wih = jnp.concatenate([params['pat_wih_c'], params['pat_wih_t'],
                           params['pat_wih_f']], axis=0)
    inp = jnp.concatenate([ce, td, feat], axis=1)
    h = jnp.tanh(inp @ wih + pe @ params['pat_whh'] + params['pat_b'])
    return _ref_normalize(h)


def _ref_project(params, pd, pid, td):
    pe = pd[pid]
    return pe * (1.0 + td @ params['embed_w'] + params['embed_b'])


# ------------------------------------ main ------------------------------------

if __name__ == "__main__":
    dynamic_size = 32
    feature_size = 8
    n_patient = 4
    n_total_medical_code = 16
    n_codes_in_event = 8
    n_ancestors = 4
    n_events = 6

    key = jax.random.PRNGKey(0)
    kp, kc, ka, kf, kt, kinit, ke1, ke2, ke3, ke4 = jax.random.split(key, 10)
    params = init_params(kinit, dynamic_size, feature_size)

    patient_dynamic = jax.random.normal(kp, (n_patient, dynamic_size), jnp.float32)
    code_dynamic = jax.random.normal(kc, (n_total_medical_code, dynamic_size),
                                     jnp.float32)
    init_code_dynamic = code_dynamic        # unused by forward (signature parity)
    adj = jax.random.uniform(ka, (n_total_medical_code, n_total_medical_code),
                             jnp.float32)
    adj = adj / jnp.sum(adj, axis=1, keepdims=True)   # row-normalized adjacency

    patientid = jnp.array([1], dtype=jnp.int32)
    codeid = jnp.arange(n_codes_in_event, dtype=jnp.int32)
    ancestorid = jnp.arange(n_ancestors, dtype=jnp.int32)

    feats_code = jax.random.normal(kf, (n_codes_in_event, feature_size), jnp.float32)
    td_code = jax.random.uniform(kt, (n_codes_in_event, 1), jnp.float32)
    feats_pat = feats_code[:1]
    td_pat = td_code[:1]

    # per-select (module API parity) -------------------------------------------
    out_code = forward(params, patient_dynamic, code_dynamic, init_code_dynamic, adj,
                       patientid, codeid, ancestorid,
                       features=feats_code, timediffs=td_code, select='code_update')
    out_anc = forward(params, patient_dynamic, code_dynamic, init_code_dynamic, adj,
                      patientid, codeid, ancestorid, select='ancestor_update')
    out_pat = forward(params, patient_dynamic, code_dynamic, init_code_dynamic, adj,
                      patientid, codeid, ancestorid,
                      features=feats_pat, timediffs=td_pat, select='patient_update')
    out_proj = forward(params, patient_dynamic, code_dynamic, init_code_dynamic, adj,
                       patientid, codeid, ancestorid,
                       timediffs=td_pat, select='project')

    # fused single-launch variants ---------------------------------------------
    out_code2, out_anc2 = forward_code_and_ancestor_update(
        params, patient_dynamic, code_dynamic, adj, patientid, codeid, ancestorid,
        features=feats_code, timediffs=td_code)
    out_pat2, out_proj2 = forward_patient_update_and_project(
        params, patient_dynamic, code_dynamic, patientid, codeid,
        features=feats_pat, timediffs=td_pat)

    # batched event grid (one launch for E events) ------------------------------
    pid_tbl = jax.random.randint(ke1, (n_events,), 0, n_patient, jnp.int32)
    cid_tbl = jax.random.randint(ke2, (n_events, n_codes_in_event), 0,
                                 n_total_medical_code, jnp.int32)
    feat_tbl = jax.random.normal(ke3, (n_events, n_codes_in_event, feature_size),
                                 jnp.float32)
    td_tbl = jax.random.uniform(ke4, (n_events, n_codes_in_event, 1), jnp.float32)
    out_events = forward_code_update_events(
        params, patient_dynamic, code_dynamic, adj, pid_tbl, cid_tbl, feat_tbl, td_tbl)

    jax.block_until_ready((out_code, out_anc, out_pat, out_proj,
                           out_code2, out_anc2, out_pat2, out_proj2, out_events))

    # shape checks
    assert out_code.shape == (n_codes_in_event, dynamic_size)
    assert out_anc.shape == (n_ancestors, dynamic_size)
    assert out_pat.shape == (1, dynamic_size)
    assert out_proj.shape == (1, dynamic_size)
    assert out_events.shape == (n_events, n_codes_in_event, dynamic_size)

    # numerical checks vs pure-JAX references
    r_code = _ref_code_update(params, patient_dynamic, code_dynamic, adj,
                              patientid, codeid, td_code, feats_code)
    r_anc = _ref_ancestor_update(params, code_dynamic, adj, ancestorid)
    r_pat = _ref_patient_update(params, patient_dynamic, code_dynamic,
                                patientid, codeid, td_pat, feats_pat)
    r_proj = _ref_project(params, patient_dynamic, patientid, td_pat)
    r_events = jnp.stack([
        _ref_code_update(params, patient_dynamic, code_dynamic, adj,
                         pid_tbl[e:e + 1], cid_tbl[e], td_tbl[e], feat_tbl[e])
        for e in range(n_events)])

    assert bool(jnp.allclose(out_code, r_code, atol=1e-5, rtol=1e-5))
    assert bool(jnp.allclose(out_anc, r_anc, atol=1e-5, rtol=1e-5))
    assert bool(jnp.allclose(out_pat, r_pat, atol=1e-5, rtol=1e-5))
    assert bool(jnp.allclose(out_proj, r_proj, atol=1e-5, rtol=1e-5))
    assert bool(jnp.allclose(out_code2, r_code, atol=1e-5, rtol=1e-5))
    assert bool(jnp.allclose(out_anc2, r_anc, atol=1e-5, rtol=1e-5))
    assert bool(jnp.allclose(out_pat2, r_pat, atol=1e-5, rtol=1e-5))
    assert bool(jnp.allclose(out_proj2, r_proj, atol=1e-5, rtol=1e-5))
    assert bool(jnp.allclose(out_events, r_events, atol=1e-5, rtol=1e-5))

    print("KERNEL_OK")
</pallas_src>

<mosaic_0001>
module attributes {stable_mosaic.version = 11 : i64} {
  func.func @code_update_kernel(%arg0: memref<16x1xi32, #tpu.memory_space<vmem>>, %arg1: memref<16x32xf32, #tpu.memory_space<vmem>>, %arg2: memref<16x16xf32, #tpu.memory_space<vmem>>, %arg3: memref<4x32xf32, #tpu.memory_space<vmem>>, %arg4: memref<8x1xf32, #tpu.memory_space<vmem>>, %arg5: memref<8x8xf32, #tpu.memory_space<vmem>>, %arg6: memref<152x32xf32, #tpu.memory_space<vmem>>, %arg7: memref<8x32xf32, #tpu.memory_space<vmem>>) attributes {dimension_semantics = [], scalar_prefetch = 0 : i64, scratch_operands = 0 : i64, tpu.core_type = #tpu.core_type<tc>} {
    %c0 = arith.constant 0 : index
    %c0_0 = arith.constant 0 : index
    %0 = vector.load %arg1[%c0, %c0_0] : memref<16x32xf32, #tpu.memory_space<vmem>>, vector<16x32xf32>
    %c0_1 = arith.constant 0 : index
    %c0_2 = arith.constant 0 : index
    %1 = vector.load %arg2[%c0_1, %c0_2] : memref<16x16xf32, #tpu.memory_space<vmem>>, vector<16x16xf32>
    %c0_3 = arith.constant 0 : index
    %c0_4 = arith.constant 0 : index
    %2 = vector.load %arg6[%c0_3, %c0_4] : memref<152x32xf32, #tpu.memory_space<vmem>>, vector<32x32xf32>
    %c32 = arith.constant 32 : index
    %c0_5 = arith.constant 0 : index
    %3 = vector.load %arg6[%c32, %c0_5] : memref<152x32xf32, #tpu.memory_space<vmem>>, vector<32x32xf32>
    %cst = arith.constant dense<0.000000e+00> : vector<16x32xf32>
    %4 = tpu.matmul %0, %2, %cst {dimension_numbers = #tpu.dot_dimension_numbers<[1], [0], [0], [1], [0, 0, 1, 1], [], []>} : vector<16x32xf32>, vector<32x32xf32>, vector<16x32xf32> -> vector<16x32xf32>
    %cst_6 = arith.constant dense<0.000000e+00> : vector<16x32xf32>
    %5 = tpu.matmul %1, %4, %cst_6 {dimension_numbers = #tpu.dot_dimension_numbers<[1], [0], [0], [1], [0, 0, 1, 1], [], []>} : vector<16x16xf32>, vector<16x32xf32>, vector<16x32xf32> -> vector<16x32xf32>
    %cst_7 = arith.constant 0.000000e+00 : f32
    %6 = vector.broadcast %cst_7 : f32 to vector<16x32xf32>
    %7 = arith.maximumf %5, %6 : vector<16x32xf32>
    %cst_8 = arith.constant dense<0.000000e+00> : vector<16x32xf32>
    %8 = tpu.matmul %7, %3, %cst_8 {dimension_numbers = #tpu.dot_dimension_numbers<[1], [0], [0], [1], [0, 0, 1, 1], [], []>} : vector<16x32xf32>, vector<32x32xf32>, vector<16x32xf32> -> vector<16x32xf32>
    %cst_9 = arith.constant dense<0.000000e+00> : vector<16x32xf32>
    %9 = tpu.matmul %1, %8, %cst_9 {dimension_numbers = #tpu.dot_dimension_numbers<[1], [0], [0], [1], [0, 0, 1, 1], [], []>} : vector<16x16xf32>, vector<16x32xf32>, vector<16x32xf32> -> vector<16x32xf32>
    %cst_10 = arith.constant 0.000000e+00 : f32
    %10 = vector.broadcast %cst_10 : f32 to vector<16x32xf32>
    %11 = arith.maximumf %9, %10 : vector<16x32xf32>
    %c0_11 = arith.constant 0 : index
    %c0_12 = arith.constant 0 : index
    %12 = vector.load %arg0[%c0_11, %c0_12] : memref<16x1xi32, #tpu.memory_space<vmem>>, vector<16x1xi32>
    %13 = vector.extract_strided_slice %12 {offsets = [0, 0], sizes = [1, 1], strides = [1, 1]} : vector<16x1xi32> to vector<1x1xi32>
    %14 = tpu.iota {dimensions = array<i32: 1>} : vector<1x4xi32>
    %15 = vector.broadcast %13 : vector<1x1xi32> to vector<1x4xi32>
    %16 = arith.cmpi eq, %14, %15 : vector<1x4xi32>
    %17 = arith.extui %16 : vector<1x4xi1> to vector<1x4xi32>
    %18 = arith.sitofp %17 : vector<1x4xi32> to vector<1x4xf32>
    %c0_13 = arith.constant 0 : index
    %c0_14 = arith.constant 0 : index
    %19 = vector.load %arg3[%c0_13, %c0_14] : memref<4x32xf32, #tpu.memory_space<vmem>>, vector<4x32xf32>
    %cst_15 = arith.constant dense<0.000000e+00> : vector<1x32xf32>
    %20 = tpu.matmul %18, %19, %cst_15 {dimension_numbers = #tpu.dot_dimension_numbers<[1], [0], [0], [1], [0, 0, 1, 1], [], []>} : vector<1x4xf32>, vector<4x32xf32>, vector<1x32xf32> -> vector<1x32xf32>
    %21 = vector.extract_strided_slice %12 {offsets = [8, 0], sizes = [8, 1], strides = [1, 1]} : vector<16x1xi32> to vector<8x1xi32>
    %22 = tpu.iota {dimensions = array<i32: 1>} : vector<8x16xi32>
    %23 = vector.broadcast %21 : vector<8x1xi32> to vector<8x16xi32>
    %24 = arith.cmpi eq, %22, %23 : vector<8x16xi32>
    %25 = arith.extui %24 : vector<8x16xi1> to vector<8x16xi32>
    %26 = arith.sitofp %25 : vector<8x16xi32> to vector<8x16xf32>
    %cst_16 = arith.constant dense<0.000000e+00> : vector<8x32xf32>
    %27 = tpu.matmul %26, %11, %cst_16 {dimension_numbers = #tpu.dot_dimension_numbers<[1], [0], [0], [1], [0, 0, 1, 1], [], []>} : vector<8x16xf32>, vector<16x32xf32>, vector<8x32xf32> -> vector<8x32xf32>
    %c64 = arith.constant 64 : index
    %c0_17 = arith.constant 0 : index
    %28 = vector.load %arg6[%c64, %c0_17] : memref<152x32xf32, #tpu.memory_space<vmem>>, vector<32x32xf32>
    %cst_18 = arith.constant dense<0.000000e+00> : vector<1x32xf32>
    %29 = tpu.matmul %20, %28, %cst_18 {dimension_numbers = #tpu.dot_dimension_numbers<[1], [0], [0], [1], [0, 0, 1, 1], [], []>} : vector<1x32xf32>, vector<32x32xf32>, vector<1x32xf32> -> vector<1x32xf32>
    %c0_19 = arith.constant 0 : index
    %c0_20 = arith.constant 0 : index
    %30 = vector.load %arg4[%c0_19, %c0_20] : memref<8x1xf32, #tpu.memory_space<vmem>>, vector<8x1xf32>
    %c136 = arith.constant 136 : index
    %c0_21 = arith.constant 0 : index
    %31 = vector.load %arg6[%c136, %c0_21] : memref<152x32xf32, #tpu.memory_space<vmem>>, vector<1x32xf32>
    %32 = vector.broadcast %30 : vector<8x1xf32> to vector<8x32xf32>
    %33 = vector.broadcast %31 : vector<1x32xf32> to vector<8x32xf32>
    %34 = arith.mulf %32, %33 : vector<8x32xf32>
    %35 = vector.broadcast %29 : vector<1x32xf32> to vector<8x32xf32>
    %36 = arith.addf %35, %34 : vector<8x32xf32>
    %c0_22 = arith.constant 0 : index
    %c0_23 = arith.constant 0 : index
    %37 = vector.load %arg5[%c0_22, %c0_23] : memref<8x8xf32, #tpu.memory_space<vmem>>, vector<8x8xf32>
    %c128 = arith.constant 128 : index
    %c0_24 = arith.constant 0 : index
    %38 = vector.load %arg6[%c128, %c0_24] : memref<152x32xf32, #tpu.memory_space<vmem>>, vector<8x32xf32>
    %cst_25 = arith.constant dense<0.000000e+00> : vector<8x32xf32>
    %39 = tpu.matmul %37, %38, %cst_25 {dimension_numbers = #tpu.dot_dimension_numbers<[1], [0], [0], [1], [0, 0, 1, 1], [], []>} : vector<8x8xf32>, vector<8x32xf32>, vector<8x32xf32> -> vector<8x32xf32>
    %40 = arith.addf %36, %39 : vector<8x32xf32>
    %c96 = arith.constant 96 : index
    %c0_26 = arith.constant 0 : index
    %41 = vector.load %arg6[%c96, %c0_26] : memref<152x32xf32, #tpu.memory_space<vmem>>, vector<32x32xf32>
    %cst_27 = arith.constant dense<0.000000e+00> : vector<8x32xf32>
    %42 = tpu.matmul %27, %41, %cst_27 {dimension_numbers = #tpu.dot_dimension_numbers<[1], [0], [0], [1], [0, 0, 1, 1], [], []>} : vector<8x32xf32>, vector<32x32xf32>, vector<8x32xf32> -> vector<8x32xf32>
    %43 = arith.addf %40, %42 : vector<8x32xf32>
    %c144 = arith.constant 144 : index
    %c0_28 = arith.constant 0 : index
    %44 = vector.load %arg6[%c144, %c0_28] : memref<152x32xf32, #tpu.memory_space<vmem>>, vector<1x32xf32>
    %45 = vector.broadcast %44 : vector<1x32xf32> to vector<8x32xf32>
    %46 = arith.addf %43, %45 : vector<8x32xf32>
    %47 = math.tanh %46 : vector<8x32xf32>
    %48 = arith.mulf %47, %47 : vector<8x32xf32>
    %cst_29 = arith.constant dense<0.000000e+00> : vector<8xf32>
    %49 = vector.multi_reduction <add>, %48, %cst_29 [1] : vector<8x32xf32> to vector<8xf32>
    %50 = vector.shape_cast %49 : vector<8xf32> to vector<8x1xf32>
    %cst_30 = arith.constant 1.000000e-24 : f32
    %51 = vector.broadcast %cst_30 : f32 to vector<8x1xf32>
    %52 = arith.maximumf %50, %51 : vector<8x1xf32>
    %53 = math.rsqrt %52 : vector<8x1xf32>
    %54 = vector.broadcast %53 : vector<8x1xf32> to vector<8x32xf32>
    %55 = arith.mulf %47, %54 : vector<8x32xf32>
    %c0_31 = arith.constant 0 : index
    %c0_32 = arith.constant 0 : index
    %56 = vector.load %arg7[%c0_31, %c0_32] : memref<8x32xf32, #tpu.memory_space<vmem>>, vector<8x32xf32>
    tpu.vector_store %arg7[%c0_31, %c0_32], %55 {strides = array<i32>} : memref<8x32xf32, #tpu.memory_space<vmem>>, vector<8x32xf32>,
    return
  }
}

</mosaic_0001>

<llo_original>
// kernel: tpu_custom_call.1
$region0: #{tpu_custom_call.1}
  #allocation0 [shape = 'u32[]', space=smem, size = 0x4, offset = 0x4, fixed_abs, tag = 'smem constant byte address 0x4 - core index']
  #allocation1 [shape = 'u32[144,128]{1,0:T(1,128)}', space=vmem, size = 0x12000, scoped, tag = 'internal scratch']
  %s0 = inlined_call_operand.vmem [shape: s32[16,1], index: 0, kind: input, shape index: {}]
  %s1 = inlined_call_operand.vmem [shape: f32[16,32], index: 1, kind: input, shape index: {}]
  %s2 = inlined_call_operand.vmem [shape: f32[16,16], index: 2, kind: input, shape index: {}]
  %s3 = inlined_call_operand.vmem [shape: f32[4,32], index: 3, kind: input, shape index: {}]
  %s4 = inlined_call_operand.vmem [shape: f32[8,1], index: 4, kind: input, shape index: {}]
  %s5 = inlined_call_operand.vmem [shape: f32[8,8], index: 5, kind: input, shape index: {}]
  %s6 = inlined_call_operand.vmem [shape: f32[152,32], index: 6, kind: input, shape index: {}]
  %s7 = inlined_call_operand.hbm [shape: f32[8,32], index: 7, kind: output, shape index: {}]
  %s8 = sld [smem:[#allocation0]]
  $region38: #{tpu_custom_call.1} parent=0
    _
  %s10 = ssub.s32 1, %s8
  %s11 = scalar_select 0, %s10, %s8
  $region1: #{tpu_custom_call.1} parent=0
    #allocation2 [shape = 'u8[4096]{0}', space=vmem, size = 0x1000, scoped, tag = 'output window, operand 0, single buffered']
    #allocation3 [shape = 's32[1]{0}', space=sflag, size = 0x4, scoped, tag = 'scoped memory for tpu_custom_call.1']
    %12 = vsyncpa [#allocation3], 0
    // Predicated region
    $region2: #{tpu_custom_call.1} parent=1 // pred_check
      _
    $region3: #{tpu_custom_call.1} parent=1 // pred_check_branch
      %14 = sbr.rel (0) target = $region5
    $region4: #{tpu_custom_call.1} parent=1 // pred_region
      _
    $region5: #{tpu_custom_call.1} parent=1 // pred_fallthru
      _
    // Predicated region
    $region6: #{tpu_custom_call.1} parent=1 // pred_check
      _
    $region7: #{tpu_custom_call.1} parent=1 // pred_check_branch
      %16 = sbr.rel (0) target = $region9
    $region8: #{tpu_custom_call.1} parent=1 // pred_region
      _
    $region9: #{tpu_custom_call.1} parent=1 // pred_fallthru
      _
    // Predicated region
    $region10: #{tpu_custom_call.1} parent=1 // pred_check
      _
    $region11: #{tpu_custom_call.1} parent=1 // pred_check_branch
      %18 = sbr.rel (0) target = $region13
    $region12: #{tpu_custom_call.1} parent=1 // pred_region
      _
    $region13: #{tpu_custom_call.1} parent=1 // pred_fallthru
      _
    // Predicated region
    $region14: #{tpu_custom_call.1} parent=1 // pred_check
      _
    $region15: #{tpu_custom_call.1} parent=1 // pred_check_branch
      %20 = sbr.rel (0) target = $region17
    $region16: #{tpu_custom_call.1} parent=1 // pred_region
      _
    $region17: #{tpu_custom_call.1} parent=1 // pred_fallthru
      _
    // Predicated region
    $region18: #{tpu_custom_call.1} parent=1 // pred_check
      _
    $region19: #{tpu_custom_call.1} parent=1 // pred_check_branch
      %22 = sbr.rel (0) target = $region21
    $region20: #{tpu_custom_call.1} parent=1 // pred_region
      _
    $region21: #{tpu_custom_call.1} parent=1 // pred_fallthru
      _
    // Predicated region
    $region22: #{tpu_custom_call.1} parent=1 // pred_check
      _
    $region23: #{tpu_custom_call.1} parent=1 // pred_check_branch
      %24 = sbr.rel (0) target = $region25
    $region24: #{tpu_custom_call.1} parent=1 // pred_region
      _
    $region25: #{tpu_custom_call.1} parent=1 // pred_fallthru
      _
    // Predicated region
    $region26: #{tpu_custom_call.1} parent=1 // pred_check
      _
    $region27: #{tpu_custom_call.1} parent=1 // pred_check_branch
      %26 = sbr.rel (0) target = $region29
    $region28: #{tpu_custom_call.1} parent=1 // pred_region
      _
    $region29: #{tpu_custom_call.1} parent=1 // pred_fallthru
      _
    %v27 = vld [vmem:[%s1] sm:$0xff]
    %v28 = vld [vmem:[%s1 + $0x8] sm:$0xff]
    %v29 = vld [vmem:[%s2] sm:$0xff]
    %v30 = vld [vmem:[%s2 + $0x8] sm:$0xff]
    %v31 = vld [vmem:[%s6] sm:$0xff]
    %v32 = vld [vmem:[%s6 + $0x8] sm:$0xff]
    %v33 = vld [vmem:[%s6 + $0x10] sm:$0xff]
    %v34 = vld [vmem:[%s6 + $0x18] sm:$0xff]
    %v35 = vld [vmem:[%s6 + $0x20] sm:$0xff]
    %v36 = vld [vmem:[%s6 + $0x28] sm:$0xff]
    %v37 = vld [vmem:[%s6 + $0x30] sm:$0xff]
    %v38 = vld [vmem:[%s6 + $0x38] sm:$0xff]
    %vm39 = vcmask 261120
    %v41 = vsel %vm39, %v27, 0
    %v44 = vsel %vm39, %v28, 0
    %46 = vmatprep.subr.mxu0 0.0
    %47 = vmatpush1.msra.mxu0 %v31
    %48 = vmatprep.subr.mxu0 0.0
    %49 = vmatpush1.msra.mxu0 %v32
    %50 = vmatprep.subr.mxu0 0.0
    %51 = vmatpush1.msra.mxu0 %v33
    %52 = vmatprep.subr.mxu0 0.0
    %53 = vmatpush1.msra.mxu0 %v34
    %54 = vmatprep.subr.mxu0 0.0
    %55 = vmatpush1.msra.mxu0 0.0
    %56 = vmatprep.subr.mxu0 0.0
    %57 = vmatpush1.msra.mxu0 0.0
    %58 = vmatprep.subr.mxu0 0.0
    %59 = vmatpush1.msra.mxu0 0.0
    %60 = vmatprep.subr.mxu0 0.0
    %61 = vmatpush1.msra.mxu0 0.0
    %62 = vmatprep.subr.mxu0 0.0
    %63 = vmatpush1.msra.mxu0 0.0
    %64 = vmatprep.subr.mxu0 0.0
    %65 = vmatpush1.msra.mxu0 0.0
    %66 = vmatprep.subr.mxu0 0.0
    %67 = vmatpush1.msra.mxu0 0.0
    %68 = vmatprep.subr.mxu0 0.0
    %69 = vmatpush1.msra.mxu0 0.0
    %70 = vmatprep.subr.mxu0 0.0
    %71 = vmatpush1.msra.mxu0 0.0
    %72 = vmatprep.subr.mxu0 0.0
    %73 = vmatpush1.msra.mxu0 0.0
    %74 = vmatprep.subr.mxu0 0.0
    %75 = vmatpush1.msra.mxu0 0.0
    %76 = vmatprep.subr.mxu0 0.0
    %77 = vmatpush1.msra.mxu0 0.0
    %78 = vmatprep.subr.mxu0 0.0
    %79 = vmatpush1.msra.mxu0 0.0
    %80 = vmatprep.subr.mxu0 0.0
    %81 = vmatpush1.msra.mxu0 0.0
    %82 = vmatprep.subr.mxu0 0.0
    %83 = vmatpush1.msra.mxu0 0.0
    %84 = vmatprep.subr.mxu0 0.0
    %85 = vmatpush1.msra.mxu0 0.0
    %86 = vmatprep.subr.mxu0 0.0
    %87 = vmatpush1.msra.mxu0 0.0
    %88 = vmatprep.subr.mxu0 0.0
    %89 = vmatpush1.msra.mxu0 0.0
    %90 = vmatprep.subr.mxu0 0.0
    %91 = vmatpush1.msra.mxu0 0.0
    %92 = vmatprep.subr.mxu0 0.0
    %93 = vmatpush1.msra.mxu0 0.0
    %94 = vmatprep.subr.mxu0 0.0
    %95 = vmatpush1.msra.mxu0 0.0
    %96 = vmatprep.subr.mxu0 0.0
    %97 = vmatpush1.msra.mxu0 0.0
    %98 = vmatprep.subr.mxu0 0.0
    %99 = vmatpush1.msra.mxu0 0.0
    %100 = vmatprep.subr.mxu0 0.0
    %101 = vmatpush1.msra.mxu0 0.0
    %102 = vmatprep.subr.mxu0 0.0
    %103 = vmatpush1.msra.mxu0 0.0
    %104 = vmatprep.subr.mxu0 0.0
    %105 = vmatpush1.msra.mxu0 0.0
    %106 = vmatprep.subr.mxu0 0.0
    %107 = vmatpush1.msra.mxu0 0.0
    %108 = vmatprep.subr.mxu0 0.0
    %109 = vmatpush1.msra.mxu0 0.0
    %110 = vmatprep.mubr.f32.mxu0 0.0
    %111 = vmatmul.mubr.f32.gmra.mrb[0].mxu0 %v41
    %v112 = vpop.f32.mrb[0].mxu0
    %v113 = vadd.f32 0.0, %v112
    %v114 = vpop.f32.mrb[0].mxu0
    %115 = vmatprep.mubr.f32.mxu0 0.0
    %116 = vmatmul.mubr.f32.gmra.mrb[0].mxu0 %v44
    %v117 = vpop.f32.mrb[0].mxu0
    %v118 = vadd.f32 0.0, %v117
    %v119 = vpop.f32.mrb[0].mxu0
    %120 = vdwg.mxu0
    %vm121 = vcmask 130048
    %v123 = vsel %vm121, %v29, 0
    %v126 = vsel %vm121, %v30, 0
    %128 = vmatprep.subr.mxu0 0.0
    %129 = vmatpush1.msra.mxu0 %v113
    %130 = vmatprep.subr.mxu0 0.0
    %131 = vmatpush1.msra.mxu0 %v118
    %132 = vmatprep.subr.mxu0 0.0
    %133 = vmatpush1.msra.mxu0 0.0
    %134 = vmatprep.subr.mxu0 0.0
    %135 = vmatpush1.msra.mxu0 0.0
    %136 = vmatprep.subr.mxu0 0.0
    %137 = vmatpush1.msra.mxu0 0.0
    %138 = vmatprep.subr.mxu0 0.0
    %139 = vmatpush1.msra.mxu0 0.0
    %140 = vmatprep.subr.mxu0 0.0
    %141 = vmatpush1.msra.mxu0 0.0
    %142 = vmatprep.subr.mxu0 0.0
    %143 = vmatpush1.msra.mxu0 0.0
    %144 = vmatprep.subr.mxu0 0.0
    %145 = vmatpush1.msra.mxu0 0.0
    %146 = vmatprep.subr.mxu0 0.0
    %147 = vmatpush1.msra.mxu0 0.0
    %148 = vmatprep.subr.mxu0 0.0
    %149 = vmatpush1.msra.mxu0 0.0
    %150 = vmatprep.subr.mxu0 0.0
    %151 = vmatpush1.msra.mxu0 0.0
    %152 = vmatprep.subr.mxu0 0.0
    %153 = vmatpush1.msra.mxu0 0.0
    %154 = vmatprep.subr.mxu0 0.0
    %155 = vmatpush1.msra.mxu0 0.0
    %156 = vmatprep.subr.mxu0 0.0
    %157 = vmatpush1.msra.mxu0 0.0
    %158 = vmatprep.subr.mxu0 0.0
    %159 = vmatpush1.msra.mxu0 0.0
    %160 = vmatprep.subr.mxu0 0.0
    %161 = vmatpush1.msra.mxu0 0.0
    %162 = vmatprep.subr.mxu0 0.0
    %163 = vmatpush1.msra.mxu0 0.0
    %164 = vmatprep.subr.mxu0 0.0
    %165 = vmatpush1.msra.mxu0 0.0
    %166 = vmatprep.subr.mxu0 0.0
    %167 = vmatpush1.msra.mxu0 0.0
    %168 = vmatprep.subr.mxu0 0.0
    %169 = vmatpush1.msra.mxu0 0.0
    %170 = vmatprep.subr.mxu0 0.0
    %171 = vmatpush1.msra.mxu0 0.0
    %172 = vmatprep.subr.mxu0 0.0
    %173 = vmatpush1.msra.mxu0 0.0
    %174 = vmatprep.subr.mxu0 0.0
    %175 = vmatpush1.msra.mxu0 0.0
    %176 = vmatprep.subr.mxu0 0.0
    %177 = vmatpush1.msra.mxu0 0.0
    %178 = vmatprep.subr.mxu0 0.0
    %179 = vmatpush1.msra.mxu0 0.0
    %180 = vmatprep.subr.mxu0 0.0
    %181 = vmatpush1.msra.mxu0 0.0
    %182 = vmatprep.subr.mxu0 0.0
    %183 = vmatpush1.msra.mxu0 0.0
    %184 = vmatprep.subr.mxu0 0.0
    %185 = vmatpush1.msra.mxu0 0.0
    %186 = vmatprep.subr.mxu0 0.0
    %187 = vmatpush1.msra.mxu0 0.0
    %188 = vmatprep.subr.mxu0 0.0
    %189 = vmatpush1.msra.mxu0 0.0
    %190 = vmatprep.subr.mxu0 0.0
    %191 = vmatpush1.msra.mxu0 0.0
    %192 = vmatprep.mubr.f32.mxu0 0.0
    %193 = vmatmul.mubr.f32.gmra.mrb[0].mxu0 %v123
    %v194 = vpop.f32.mrb[0].mxu0
    %v195 = vadd.f32 0.0, %v194
    %v196 = vpop.f32.mrb[0].mxu0
    %197 = vmatprep.mubr.f32.mxu0 0.0
    %198 = vmatmul.mubr.f32.gmra.mrb[0].mxu0 %v126
    %v199 = vpop.f32.mrb[0].mxu0
    %v200 = vadd.f32 0.0, %v199
    %v201 = vpop.f32.mrb[0].mxu0
    %202 = vdwg.mxu0
    %v203 = vmax.f32 %v195, 0.0
    %v204 = vmax.f32 %v200, 0.0
    %v206 = vsel %vm39, %v203, 0
    %v209 = vsel %vm39, %v204, 0
    %211 = vmatprep.subr.mxu0 0.0
    %212 = vmatpush1.msra.mxu0 %v35
    %213 = vmatprep.subr.mxu0 0.0
    %214 = vmatpush1.msra.mxu0 %v36
    %215 = vmatprep.subr.mxu0 0.0
    %216 = vmatpush1.msra.mxu0 %v37
    %217 = vmatprep.subr.mxu0 0.0
    %218 = vmatpush1.msra.mxu0 %v38
    %219 = vmatprep.subr.mxu0 0.0
    %220 = vmatpush1.msra.mxu0 0.0
    %221 = vmatprep.subr.mxu0 0.0
    %222 = vmatpush1.msra.mxu0 0.0
    %223 = vmatprep.subr.mxu0 0.0
    %224 = vmatpush1.msra.mxu0 0.0
    %225 = vmatprep.subr.mxu0 0.0
    %226 = vmatpush1.msra.mxu0 0.0
    %227 = vmatprep.subr.mxu0 0.0
    %228 = vmatpush1.msra.mxu0 0.0
    %229 = vmatprep.subr.mxu0 0.0
    %230 = vmatpush1.msra.mxu0 0.0
    %231 = vmatprep.subr.mxu0 0.0
    %232 = vmatpush1.msra.mxu0 0.0
    %233 = vmatprep.subr.mxu0 0.0
    %234 = vmatpush1.msra.mxu0 0.0
    %235 = vmatprep.subr.mxu0 0.0
    %236 = vmatpush1.msra.mxu0 0.0
    %237 = vmatprep.subr.mxu0 0.0
    %238 = vmatpush1.msra.mxu0 0.0
    %239 = vmatprep.subr.mxu0 0.0
    %240 = vmatpush1.msra.mxu0 0.0
    %241 = vmatprep.subr.mxu0 0.0
    %242 = vmatpush1.msra.mxu0 0.0
    %243 = vmatprep.subr.mxu0 0.0
    %244 = vmatpush1.msra.mxu0 0.0
    %245 = vmatprep.subr.mxu0 0.0
    %246 = vmatpush1.msra.mxu0 0.0
    %247 = vmatprep.subr.mxu0 0.0
    %248 = vmatpush1.msra.mxu0 0.0
    %249 = vmatprep.subr.mxu0 0.0
    %250 = vmatpush1.msra.mxu0 0.0
    %251 = vmatprep.subr.mxu0 0.0
    %252 = vmatpush1.msra.mxu0 0.0
    %253 = vmatprep.subr.mxu0 0.0
    %254 = vmatpush1.msra.mxu0 0.0
    %255 = vmatprep.subr.mxu0 0.0
    %256 = vmatpush1.msra.mxu0 0.0
    %257 = vmatprep.subr.mxu0 0.0
    %258 = vmatpush1.msra.mxu0 0.0
    %259 = vmatprep.subr.mxu0 0.0
    %260 = vmatpush1.msra.mxu0 0.0
    %261 = vmatprep.subr.mxu0 0.0
    %262 = vmatpush1.msra.mxu0 0.0
    %263 = vmatprep.subr.mxu0 0.0
    %264 = vmatpush1.msra.mxu0 0.0
    %265 = vmatprep.subr.mxu0 0.0
    %266 = vmatpush1.msra.mxu0 0.0
    %267 = vmatprep.subr.mxu0 0.0
    %268 = vmatpush1.msra.mxu0 0.0
    %269 = vmatprep.subr.mxu0 0.0
    %270 = vmatpush1.msra.mxu0 0.0
    %271 = vmatprep.subr.mxu0 0.0
    %272 = vmatpush1.msra.mxu0 0.0
    %273 = vmatprep.subr.mxu0 0.0
    %274 = vmatpush1.msra.mxu0 0.0
    %275 = vmatprep.mubr.f32.mxu0 0.0
    %276 = vmatmul.mubr.f32.gmra.mrb[0].mxu0 %v206
    %v277 = vpop.f32.mrb[0].mxu0
    %v278 = vadd.f32 0.0, %v277
    %v279 = vpop.f32.mrb[0].mxu0
    %280 = vmatprep.mubr.f32.mxu0 0.0
    %281 = vmatmul.mubr.f32.gmra.mrb[0].mxu0 %v209
    %v282 = vpop.f32.mrb[0].mxu0
    %v283 = vadd.f32 0.0, %v282
    %v284 = vpop.f32.mrb[0].mxu0
    %285 = vdwg.mxu0
    %286 = vmatprep.subr.mxu0 0.0
    %287 = vmatpush1.msra.mxu0 %v278
    %288 = vmatprep.subr.mxu0 0.0
    %289 = vmatpush1.msra.mxu0 %v283
    %290 = vmatprep.subr.mxu0 0.0
    %291 = vmatpush1.msra.mxu0 0.0
    %292 = vmatprep.subr.mxu0 0.0
    %293 = vmatpush1.msra.mxu0 0.0
    %294 = vmatprep.subr.mxu0 0.0
    %295 = vmatpush1.msra.mxu0 0.0
    %296 = vmatprep.subr.mxu0 0.0
    %297 = vmatpush1.msra.mxu0 0.0
    %298 = vmatprep.subr.mxu0 0.0
    %299 = vmatpush1.msra.mxu0 0.0
    %300 = vmatprep.subr.mxu0 0.0
    %301 = vmatpush1.msra.mxu0 0.0
    %302 = vmatprep.subr.mxu0 0.0
    %303 = vmatpush1.msra.mxu0 0.0
    %304 = vmatprep.subr.mxu0 0.0
    %305 = vmatpush1.msra.mxu0 0.0
    %306 = vmatprep.subr.mxu0 0.0
    %307 = vmatpush1.msra.mxu0 0.0
    %308 = vmatprep.subr.mxu0 0.0
    %309 = vmatpush1.msra.mxu0 0.0
    %310 = vmatprep.subr.mxu0 0.0
    %311 = vmatpush1.msra.mxu0 0.0
    %312 = vmatprep.subr.mxu0 0.0
    %313 = vmatpush1.msra.mxu0 0.0
    %314 = vmatprep.subr.mxu0 0.0
    %315 = vmatpush1.msra.mxu0 0.0
    %316 = vmatprep.subr.mxu0 0.0
    %317 = vmatpush1.msra.mxu0 0.0
    %318 = vmatprep.subr.mxu0 0.0
    %319 = vmatpush1.msra.mxu0 0.0
    %320 = vmatprep.subr.mxu0 0.0
    %321 = vmatpush1.msra.mxu0 0.0
    %322 = vmatprep.subr.mxu0 0.0
    %323 = vmatpush1.msra.mxu0 0.0
    %324 = vmatprep.subr.mxu0 0.0
    %325 = vmatpush1.msra.mxu0 0.0
    %326 = vmatprep.subr.mxu0 0.0
    %327 = vmatpush1.msra.mxu0 0.0
    %328 = vmatprep.subr.mxu0 0.0
    %329 = vmatpush1.msra.mxu0 0.0
    %330 = vmatprep.subr.mxu0 0.0
    %331 = vmatpush1.msra.mxu0 0.0
    %332 = vmatprep.subr.mxu0 0.0
    %333 = vmatpush1.msra.mxu0 0.0
    %334 = vmatprep.subr.mxu0 0.0
    %335 = vmatpush1.msra.mxu0 0.0
    %336 = vmatprep.subr.mxu0 0.0
    %337 = vmatpush1.msra.mxu0 0.0
    %338 = vmatprep.subr.mxu0 0.0
    %339 = vmatpush1.msra.mxu0 0.0
    %340 = vmatprep.subr.mxu0 0.0
    %341 = vmatpush1.msra.mxu0 0.0
    %342 = vmatprep.subr.mxu0 0.0
    %343 = vmatpush1.msra.mxu0 0.0
    %344 = vmatprep.subr.mxu0 0.0
    %345 = vmatpush1.msra.mxu0 0.0
    %346 = vmatprep.subr.mxu0 0.0
    %347 = vmatpush1.msra.mxu0 0.0
    %348 = vmatprep.subr.mxu0 0.0
    %349 = vmatpush1.msra.mxu0 0.0
    %350 = vmatprep.mubr.f32.mxu0 0.0
    %351 = vmatmul.mubr.f32.gmra.mrb[0].mxu0 %v123
    %v352 = vpop.f32.mrb[0].mxu0
    %v353 = vadd.f32 0.0, %v352
    %v354 = vpop.f32.mrb[0].mxu0
    %355 = vmatprep.mubr.f32.mxu0 0.0
    %356 = vmatmul.mubr.f32.gmra.mrb[0].mxu0 %v126
    %v357 = vpop.f32.mrb[0].mxu0
    %v358 = vadd.f32 0.0, %v357
    %v359 = vpop.f32.mrb[0].mxu0
    %360 = vdwg.mxu0
    %v361 = vmax.f32 %v353, 0.0
    %v362 = vmax.f32 %v358, 0.0
    %v363 = vld [vmem:[%s0] sm:$0xff]
    %v364 = vld [vmem:[%s0 + $0x8] sm:$0xff]
    %v365 = vlaneseq
    %v366 = vand.u32 %v365, 127
    %367 = vset.pattern.permute.xlu0 0
    %368 = vperm.xlu0 %367, %v363
    %v369 = vpop.permute.xlu0 %368
    %vm370 = vcmp.eq.s32.totalorder %v366, %v369
    %v371 = vsel %vm370, 1, 0
    %v372 = vcvt.s32.f32 %v371
    %v373 = vld [vmem:[%s3] sm:$0xf]
    %vm374 = vcmask 31744
    %v376 = vsel %vm374, %v372, 0
    %vm378 = vcmask 1043456
    %v380 = vsel %vm378, %v373, 0
    %382 = vmatprep.subr.mxu0 0.0
    %383 = vmatpush1.msra.mxu0 %v380
    %384 = vmatprep.subr.mxu0 0.0
    %385 = vmatpush1.msra.mxu0 0.0
    %386 = vmatprep.subr.mxu0 0.0
    %387 = vmatpush1.msra.mxu0 0.0
    %388 = vmatprep.subr.mxu0 0.0
    %389 = vmatpush1.msra.mxu0 0.0
    %390 = vmatprep.subr.mxu0 0.0
    %391 = vmatpush1.msra.mxu0 0.0
    %392 = vmatprep.subr.mxu0 0.0
    %393 = vmatpush1.msra.mxu0 0.0
    %394 = vmatprep.subr.mxu0 0.0
    %395 = vmatpush1.msra.mxu0 0.0
    %396 = vmatprep.subr.mxu0 0.0
    %397 = vmatpush1.msra.mxu0 0.0
    %398 = vmatprep.subr.mxu0 0.0
    %399 = vmatpush1.msra.mxu0 0.0
    %400 = vmatprep.subr.mxu0 0.0
    %401 = vmatpush1.msra.mxu0 0.0
    %402 = vmatprep.subr.mxu0 0.0
    %403 = vmatpush1.msra.mxu0 0.0
    %404 = vmatprep.subr.mxu0 0.0
    %405 = vmatpush1.msra.mxu0 0.0
    %406 = vmatprep.subr.mxu0 0.0
    %407 = vmatpush1.msra.mxu0 0.0
    %408 = vmatprep.subr.mxu0 0.0
    %409 = vmatpush1.msra.mxu0 0.0
    %410 = vmatprep.subr.mxu0 0.0
    %411 = vmatpush1.msra.mxu0 0.0
    %412 = vmatprep.subr.mxu0 0.0
    %413 = vmatpush1.msra.mxu0 0.0
    %414 = vmatprep.subr.mxu0 0.0
    %415 = vmatpush1.msra.mxu0 0.0
    %416 = vmatprep.subr.mxu0 0.0
    %417 = vmatpush1.msra.mxu0 0.0
    %418 = vmatprep.subr.mxu0 0.0
    %419 = vmatpush1.msra.mxu0 0.0
    %420 = vmatprep.subr.mxu0 0.0
    %421 = vmatpush1.msra.mxu0 0.0
    %422 = vmatprep.subr.mxu0 0.0
    %423 = vmatpush1.msra.mxu0 0.0
    %424 = vmatprep.subr.mxu0 0.0
    %425 = vmatpush1.msra.mxu0 0.0
    %426 = vmatprep.subr.mxu0 0.0
    %427 = vmatpush1.msra.mxu0 0.0
    %428 = vmatprep.subr.mxu0 0.0
    %429 = vmatpush1.msra.mxu0 0.0
    %430 = vmatprep.subr.mxu0 0.0
    %431 = vmatpush1.msra.mxu0 0.0
    %432 = vmatprep.subr.mxu0 0.0
    %433 = vmatpush1.msra.mxu0 0.0
    %434 = vmatprep.subr.mxu0 0.0
    %435 = vmatpush1.msra.mxu0 0.0
    %436 = vmatprep.subr.mxu0 0.0
    %437 = vmatpush1.msra.mxu0 0.0
    %438 = vmatprep.subr.mxu0 0.0
    %439 = vmatpush1.msra.mxu0 0.0
    %440 = vmatprep.subr.mxu0 0.0
    %441 = vmatpush1.msra.mxu0 0.0
    %442 = vmatprep.subr.mxu0 0.0
    %443 = vmatpush1.msra.mxu0 0.0
    %444 = vmatprep.subr.mxu0 0.0
    %445 = vmatpush1.msra.mxu0 0.0
    %446 = vmatprep.mubr.f32.mxu0 0.0
    %447 = vmatmul.mubr.f32.gmra.mrb[0].mxu0 %v376
    %v448 = vpop.f32.mrb[0].mxu0
    %v449 = vadd.f32 0.0, %v448
    %v450 = vpop.f32.mrb[0].mxu0
    %451 = vdwg.mxu0
    %452 = vset.pattern.permute.xlu0 0
    %453 = vperm.xlu0 %452, %v364
    %v454 = vpop.permute.xlu0 %453
    %vm455 = vcmp.eq.s32.totalorder %v366, %v454
    %v456 = vsel %vm455, 1, 0
    %v457 = vcvt.s32.f32 %v456
    %v459 = vsel %vm121, %v457, 0
    %461 = vmatprep.subr.mxu0 0.0
    %462 = vmatpush1.msra.mxu0 %v361
    %463 = vmatprep.subr.mxu0 0.0
    %464 = vmatpush1.msra.mxu0 %v362
    %465 = vmatprep.subr.mxu0 0.0
    %466 = vmatpush1.msra.mxu0 0.0
    %467 = vmatprep.subr.mxu0 0.0
    %468 = vmatpush1.msra.mxu0 0.0
    %469 = vmatprep.subr.mxu0 0.0
    %470 = vmatpush1.msra.mxu0 0.0
    %471 = vmatprep.subr.mxu0 0.0
    %472 = vmatpush1.msra.mxu0 0.0
    %473 = vmatprep.subr.mxu0 0.0
    %474 = vmatpush1.msra.mxu0 0.0
    %475 = vmatprep.subr.mxu0 0.0
    %476 = vmatpush1.msra.mxu0 0.0
    %477 = vmatprep.subr.mxu0 0.0
    %478 = vmatpush1.msra.mxu0 0.0
    %479 = vmatprep.subr.mxu0 0.0
    %480 = vmatpush1.msra.mxu0 0.0
    %481 = vmatprep.subr.mxu0 0.0
    %482 = vmatpush1.msra.mxu0 0.0
    %483 = vmatprep.subr.mxu0 0.0
    %484 = vmatpush1.msra.mxu0 0.0
    %485 = vmatprep.subr.mxu0 0.0
    %486 = vmatpush1.msra.mxu0 0.0
    %487 = vmatprep.subr.mxu0 0.0
    %488 = vmatpush1.msra.mxu0 0.0
    %489 = vmatprep.subr.mxu0 0.0
    %490 = vmatpush1.msra.mxu0 0.0
    %491 = vmatprep.subr.mxu0 0.0
    %492 = vmatpush1.msra.mxu0 0.0
    %493 = vmatprep.subr.mxu0 0.0
    %494 = vmatpush1.msra.mxu0 0.0
    %495 = vmatprep.subr.mxu0 0.0
    %496 = vmatpush1.msra.mxu0 0.0
    %497 = vmatprep.subr.mxu0 0.0
    %498 = vmatpush1.msra.mxu0 0.0
    %499 = vmatprep.subr.mxu0 0.0
    %500 = vmatpush1.msra.mxu0 0.0
    %501 = vmatprep.subr.mxu0 0.0
    %502 = vmatpush1.msra.mxu0 0.0
    %503 = vmatprep.subr.mxu0 0.0
    %504 = vmatpush1.msra.mxu0 0.0
    %505 = vmatprep.subr.mxu0 0.0
    %506 = vmatpush1.msra.mxu0 0.0
    %507 = vmatprep.subr.mxu0 0.0
    %508 = vmatpush1.msra.mxu0 0.0
    %509 = vmatprep.subr.mxu0 0.0
    %510 = vmatpush1.msra.mxu0 0.0
    %511 = vmatprep.subr.mxu0 0.0
    %512 = vmatpush1.msra.mxu0 0.0
    %513 = vmatprep.subr.mxu0 0.0
    %514 = vmatpush1.msra.mxu0 0.0
    %515 = vmatprep.subr.mxu0 0.0
    %516 = vmatpush1.msra.mxu0 0.0
    %517 = vmatprep.subr.mxu0 0.0
    %518 = vmatpush1.msra.mxu0 0.0
    %519 = vmatprep.subr.mxu0 0.0
    %520 = vmatpush1.msra.mxu0 0.0
    %521 = vmatprep.subr.mxu0 0.0
    %522 = vmatpush1.msra.mxu0 0.0
    %523 = vmatprep.subr.mxu0 0.0
    %524 = vmatpush1.msra.mxu0 0.0
    %525 = vmatprep.mubr.f32.mxu0 0.0
    %526 = vmatmul.mubr.f32.gmra.mrb[0].mxu0 %v459
    %v527 = vpop.f32.mrb[0].mxu0
    %v528 = vadd.f32 0.0, %v527
    %v529 = vpop.f32.mrb[0].mxu0
    %530 = vdwg.mxu0
    %v531 = vld [vmem:[%s6 + $0x40] sm:$0xff]
    %v532 = vld [vmem:[%s6 + $0x48] sm:$0xff]
    %v533 = vld [vmem:[%s6 + $0x50] sm:$0xff]
    %v534 = vld [vmem:[%s6 + $0x58] sm:$0xff]
    %v536 = vsel %vm39, %v449, 0
    %538 = vmatprep.subr.mxu0 0.0
    %539 = vmatpush1.msra.mxu0 %v531
    %540 = vmatprep.subr.mxu0 0.0
    %541 = vmatpush1.msra.mxu0 %v532
    %542 = vmatprep.subr.mxu0 0.0
    %543 = vmatpush1.msra.mxu0 %v533
    %544 = vmatprep.subr.mxu0 0.0
    %545 = vmatpush1.msra.mxu0 %v534
    %546 = vmatprep.subr.mxu0 0.0
    %547 = vmatpush1.msra.mxu0 0.0
    %548 = vmatprep.subr.mxu0 0.0
    %549 = vmatpush1.msra.mxu0 0.0
    %550 = vmatprep.subr.mxu0 0.0
    %551 = vmatpush1.msra.mxu0 0.0
    %552 = vmatprep.subr.mxu0 0.0
    %553 = vmatpush1.msra.mxu0 0.0
    %554 = vmatprep.subr.mxu0 0.0
    %555 = vmatpush1.msra.mxu0 0.0
    %556 = vmatprep.subr.mxu0 0.0
    %557 = vmatpush1.msra.mxu0 0.0
    %558 = vmatprep.subr.mxu0 0.0
    %559 = vmatpush1.msra.mxu0 0.0
    %560 = vmatprep.subr.mxu0 0.0
    %561 = vmatpush1.msra.mxu0 0.0
    %562 = vmatprep.subr.mxu0 0.0
    %563 = vmatpush1.msra.mxu0 0.0
    %564 = vmatprep.subr.mxu0 0.0
    %565 = vmatpush1.msra.mxu0 0.0
    %566 = vmatprep.subr.mxu0 0.0
    %567 = vmatpush1.msra.mxu0 0.0
    %568 = vmatprep.subr.mxu0 0.0
    %569 = vmatpush1.msra.mxu0 0.0
    %570 = vmatprep.subr.mxu0 0.0
    %571 = vmatpush1.msra.mxu0 0.0
    %572 = vmatprep.subr.mxu0 0.0
    %573 = vmatpush1.msra.mxu0 0.0
    %574 = vmatprep.subr.mxu0 0.0
    %575 = vmatpush1.msra.mxu0 0.0
    %576 = vmatprep.subr.mxu0 0.0
    %577 = vmatpush1.msra.mxu0 0.0
    %578 = vmatprep.subr.mxu0 0.0
    %579 = vmatpush1.msra.mxu0 0.0
    %580 = vmatprep.subr.mxu0 0.0
    %581 = vmatpush1.msra.mxu0 0.0
    %582 = vmatprep.subr.mxu0 0.0
    %583 = vmatpush1.msra.mxu0 0.0
    %584 = vmatprep.subr.mxu0 0.0
    %585 = vmatpush1.msra.mxu0 0.0
    %586 = vmatprep.subr.mxu0 0.0
    %587 = vmatpush1.msra.mxu0 0.0
    %588 = vmatprep.subr.mxu0 0.0
    %589 = vmatpush1.msra.mxu0 0.0
    %590 = vmatprep.subr.mxu0 0.0
    %591 = vmatpush1.msra.mxu0 0.0
    %592 = vmatprep.subr.mxu0 0.0
    %593 = vmatpush1.msra.mxu0 0.0
    %594 = vmatprep.subr.mxu0 0.0
    %595 = vmatpush1.msra.mxu0 0.0
    %596 = vmatprep.subr.mxu0 0.0
    %597 = vmatpush1.msra.mxu0 0.0
    %598 = vmatprep.subr.mxu0 0.0
    %599 = vmatpush1.msra.mxu0 0.0
    %600 = vmatprep.subr.mxu0 0.0
    %601 = vmatpush1.msra.mxu0 0.0
    %602 = vmatprep.mubr.f32.mxu0 0.0
    %603 = vmatmul.mubr.f32.gmra.mrb[0].mxu0 %v536
    %v604 = vpop.f32.mrb[0].mxu0
    %v605 = vadd.f32 0.0, %v604
    %v606 = vpop.f32.mrb[0].mxu0
    %607 = vdwg.mxu0
    %v608 = vld [vmem:[%s4] sm:$0xff]
    %v609 = vld [vmem:[%s6 + $0x88] sm:$0x1]
    %611 = vset.pattern.permute.xlu0 0
    %612 = vperm.xlu0 %611, %v608
    %v613 = vpop.permute.xlu0 %612
    %v615 = vlaneseq
    %v616 = vshrl.u32 %v615, 7
    %v617 = vsub.s32 0, %v616
    %v618 = vrot.slane %v609, %v617
    %v619 = vmul.f32 %v613, %v618
    %v620 = vlaneseq
    %v621 = vshrl.u32 %v620, 7
    %v622 = vsub.s32 0, %v621
    %v623 = vrot.slane %v605, %v622
    %v624 = vadd.f32 %v623, %v619
    %v625 = vld [vmem:[%s5] sm:$0xff]
    %v626 = vld [vmem:[%s6 + $0x80] sm:$0xff]
    %vm627 = vcmask 64512
    %v629 = vsel %vm627, %v625, 0
    %631 = vmatprep.subr.mxu0 0.0
    %632 = vmatpush1.msra.mxu0 %v626
    %633 = vmatprep.subr.mxu0 0.0
    %634 = vmatpush1.msra.mxu0 0.0
    %635 = vmatprep.subr.mxu0 0.0
    %636 = vmatpush1.msra.mxu0 0.0
    %637 = vmatprep.subr.mxu0 0.0
    %638 = vmatpush1.msra.mxu0 0.0
    %639 = vmatprep.subr.mxu0 0.0
    %640 = vmatpush1.msra.mxu0 0.0
    %641 = vmatprep.subr.mxu0 0.0
    %642 = vmatpush1.msra.mxu0 0.0
    %643 = vmatprep.subr.mxu0 0.0
    %644 = vmatpush1.msra.mxu0 0.0
    %645 = vmatprep.subr.mxu0 0.0
    %646 = vmatpush1.msra.mxu0 0.0
    %647 = vmatprep.subr.mxu0 0.0
    %648 = vmatpush1.msra.mxu0 0.0
    %649 = vmatprep.subr.mxu0 0.0
    %650 = vmatpush1.msra.mxu0 0.0
    %651 = vmatprep.subr.mxu0 0.0
    %652 = vmatpush1.msra.mxu0 0.0
    %653 = vmatprep.subr.mxu0 0.0
    %654 = vmatpush1.msra.mxu0 0.0
    %655 = vmatprep.subr.mxu0 0.0
    %656 = vmatpush1.msra.mxu0 0.0
    %657 = vmatprep.subr.mxu0 0.0
    %658 = vmatpush1.msra.mxu0 0.0
    %659 = vmatprep.subr.mxu0 0.0
    %660 = vmatpush1.msra.mxu0 0.0
    %661 = vmatprep.subr.mxu0 0.0
    %662 = vmatpush1.msra.mxu0 0.0
    %663 = vmatprep.subr.mxu0 0.0
    %664 = vmatpush1.msra.mxu0 0.0
    %665 = vmatprep.subr.mxu0 0.0
    %666 = vmatpush1.msra.mxu0 0.0
    %667 = vmatprep.subr.mxu0 0.0
    %668 = vmatpush1.msra.mxu0 0.0
    %669 = vmatprep.subr.mxu0 0.0
    %670 = vmatpush1.msra.mxu0 0.0
    %671 = vmatprep.subr.mxu0 0.0
    %672 = vmatpush1.msra.mxu0 0.0
    %673 = vmatprep.subr.mxu0 0.0
    %674 = vmatpush1.msra.mxu0 0.0
    %675 = vmatprep.subr.mxu0 0.0
    %676 = vmatpush1.msra.mxu0 0.0
    %677 = vmatprep.subr.mxu0 0.0
    %678 = vmatpush1.msra.mxu0 0.0
    %679 = vmatprep.subr.mxu0 0.0
    %680 = vmatpush1.msra.mxu0 0.0
    %681 = vmatprep.subr.mxu0 0.0
    %682 = vmatpush1.msra.mxu0 0.0
    %683 = vmatprep.subr.mxu0 0.0
    %684 = vmatpush1.msra.mxu0 0.0
    %685 = vmatprep.subr.mxu0 0.0
    %686 = vmatpush1.msra.mxu0 0.0
    %687 = vmatprep.subr.mxu0 0.0
    %688 = vmatpush1.msra.mxu0 0.0
    %689 = vmatprep.subr.mxu0 0.0
    %690 = vmatpush1.msra.mxu0 0.0
    %691 = vmatprep.subr.mxu0 0.0
    %692 = vmatpush1.msra.mxu0 0.0
    %693 = vmatprep.subr.mxu0 0.0
    %694 = vmatpush1.msra.mxu0 0.0
    %695 = vmatprep.mubr.f32.mxu0 0.0
    %696 = vmatmul.mubr.f32.gmra.mrb[0].mxu0 %v629
    %v697 = vpop.f32.mrb[0].mxu0
    %v698 = vadd.f32 0.0, %v697
    %v699 = vpop.f32.mrb[0].mxu0
    %700 = vdwg.mxu0
    %v701 = vadd.f32 %v624, %v698
    %v702 = vld [vmem:[%s6 + $0x60] sm:$0xff]
    %v703 = vld [vmem:[%s6 + $0x68] sm:$0xff]
    %v704 = vld [vmem:[%s6 + $0x70] sm:$0xff]
    %v705 = vld [vmem:[%s6 + $0x78] sm:$0xff]
    %v707 = vsel %vm39, %v528, 0
    %709 = vmatprep.subr.mxu0 0.0
    %710 = vmatpush1.msra.mxu0 %v702
    %711 = vmatprep.subr.mxu0 0.0
    %712 = vmatpush1.msra.mxu0 %v703
    %713 = vmatprep.subr.mxu0 0.0
    %714 = vmatpush1.msra.mxu0 %v704
    %715 = vmatprep.subr.mxu0 0.0
    %716 = vmatpush1.msra.mxu0 %v705
    %717 = vmatprep.subr.mxu0 0.0
    %718 = vmatpush1.msra.mxu0 0.0
    %719 = vmatprep.subr.mxu0 0.0
    %720 = vmatpush1.msra.mxu0 0.0
    %721 = vmatprep.subr.mxu0 0.0
    %722 = vmatpush1.msra.mxu0 0.0
    %723 = vmatprep.subr.mxu0 0.0
    %724 = vmatpush1.msra.mxu0 0.0
    %725 = vmatprep.subr.mxu0 0.0
    %726 = vmatpush1.msra.mxu0 0.0
    %727 = vmatprep.subr.mxu0 0.0
    %728 = vmatpush1.msra.mxu0 0.0
    %729 = vmatprep.subr.mxu0 0.0
    %730 = vmatpush1.msra.mxu0 0.0
    %731 = vmatprep.subr.mxu0 0.0
    %732 = vmatpush1.msra.mxu0 0.0
    %733 = vmatprep.subr.mxu0 0.0
    %734 = vmatpush1.msra.mxu0 0.0
    %735 = vmatprep.subr.mxu0 0.0
    %736 = vmatpush1.msra.mxu0 0.0
    %737 = vmatprep.subr.mxu0 0.0
    %738 = vmatpush1.msra.mxu0 0.0
    %739 = vmatprep.subr.mxu0 0.0
    %740 = vmatpush1.msra.mxu0 0.0
    %741 = vmatprep.subr.mxu0 0.0
    %742 = vmatpush1.msra.mxu0 0.0
    %743 = vmatprep.subr.mxu0 0.0
    %744 = vmatpush1.msra.mxu0 0.0
    %745 = vmatprep.subr.mxu0 0.0
    %746 = vmatpush1.msra.mxu0 0.0
    %747 = vmatprep.subr.mxu0 0.0
    %748 = vmatpush1.msra.mxu0 0.0
    %749 = vmatprep.subr.mxu0 0.0
    %750 = vmatpush1.msra.mxu0 0.0
    %751 = vmatprep.subr.mxu0 0.0
    %752 = vmatpush1.msra.mxu0 0.0
    %753 = vmatprep.subr.mxu0 0.0
    %754 = vmatpush1.msra.mxu0 0.0
    %755 = vmatprep.subr.mxu0 0.0
    %756 = vmatpush1.msra.mxu0 0.0
    %757 = vmatprep.subr.mxu0 0.0
    %758 = vmatpush1.msra.mxu0 0.0
    %759 = vmatprep.subr.mxu0 0.0
    %760 = vmatpush1.msra.mxu0 0.0
    %761 = vmatprep.subr.mxu0 0.0
    %762 = vmatpush1.msra.mxu0 0.0
    %763 = vmatprep.subr.mxu0 0.0
    %764 = vmatpush1.msra.mxu0 0.0
    %765 = vmatprep.subr.mxu0 0.0
    %766 = vmatpush1.msra.mxu0 0.0
    %767 = vmatprep.subr.mxu0 0.0
    %768 = vmatpush1.msra.mxu0 0.0
    %769 = vmatprep.subr.mxu0 0.0
    %770 = vmatpush1.msra.mxu0 0.0
    %771 = vmatprep.subr.mxu0 0.0
    %772 = vmatpush1.msra.mxu0 0.0
    %773 = vmatprep.mubr.f32.mxu0 0.0
    %774 = vmatmul.mubr.f32.gmra.mrb[0].mxu0 %v707
    %v775 = vpop.f32.mrb[0].mxu0
    %v776 = vadd.f32 0.0, %v775
    %v777 = vpop.f32.mrb[0].mxu0
    %778 = vdwg.mxu0
    %v779 = vadd.f32 %v701, %v776
    %v780 = vld [vmem:[%s6 + $0x90] sm:$0x1]
    %v781 = vlaneseq
    %v782 = vshrl.u32 %v781, 7
    %v783 = vsub.s32 0, %v782
    %v784 = vrot.slane %v780, %v783
    %v785 = vadd.f32 %v779, %v784
    %v786 = vtanh.pop %v785
    %v787 = vmul.f32 %v786, %v786
    %v788 = vsel %vm39, %v787, 0.0
    %789 = vadd.xlane.f32.xlu0 %v788
    %v790 = vpop.xlane.xlu0 %789
    %v791 = vmax.f32 %v790, 1e-24
    %v792 = vrsqrt.pop %v791
    %v793 = vmul.f32 %v786, %v792
    %794 = vst.msk [vmem:[#allocation2] sm:$0xff] %vm39, %v793
    // Predicated region
    $region30: #{tpu_custom_call.1} parent=1 // pred_check
      _
    $region31: #{tpu_custom_call.1} parent=1 // pred_check_branch
      %796 = sbr.rel (0) target = $region33
    $region32: #{tpu_custom_call.1} parent=1 // pred_region
      %s798 = ssub.s32 128, 128
      %799 = vsyncadd [#allocation3], %s798
      %s801 = sshll.u32 [#allocation2], 4
      %s802 = int_to_ptr.vmem [resolvable:$true] %s801
      %804 = dma.vmem_to_hbm [thread:$0]  %s802, 128, %s7, [#allocation3]
    $region33: #{tpu_custom_call.1} parent=1 // pred_fallthru
      _
    // Predicated region
    $region34: #{tpu_custom_call.1} parent=1 // pred_check
      _
    $region35: #{tpu_custom_call.1} parent=1 // pred_check_branch
      %806 = sbr.rel (0) target = $region37
    $region36: #{tpu_custom_call.1} parent=1 // pred_region
      %807 = dma.done [#allocation3], 128
    $region37: #{tpu_custom_call.1} parent=1 // pred_fallthru
      _
    %808 = vsyncpa [#allocation3], 1

</llo_original>
